<compile_context>
chip_gen: v7x
topology: tpu7x:2x2x1
jax: 0.10.0
libtpu: 0.0.40
codegen_flags: <defaults>
</compile_context>

<pallas_src>
import functools

import jax
import jax.numpy as jnp
from jax.experimental import pallas as pl
from jax.experimental.pallas import tpu as pltpu


def _round_up(x, m):
    return ((x + m - 1) // m) * m


# --------------------------------------------------------------------------- #
# Kernel
# --------------------------------------------------------------------------- #
def _mlp_kernel(num_linears, x_ref, *refs):
    """refs = (w0, b0, w1, b1, ..., o_ref).

    x_ref : [tile_n, node_in]   node-feature block (natural layout)
    w[i]  : [f_out, f_in]       pre-transposed weights
    b[i]  : [f_out, 1]          float32 biases
    o_ref : [tile_n, node_out]  output block

    Compute runs nodes-on-lanes ([features, tile_n]) so the MXU matmuls, the
    bias/ReLU epilogue and the inter-layer casts are all lane-dense; the two
    tile transposes go through the otherwise-idle XLU.
    """
    o_ref = refs[-1]
    wb = refs[:-1]

    h = x_ref[...].T                                     # [node_in, tile_n]  (XLU)
    for li in range(num_linears):
        w = wb[2 * li][...]                              # [f_out, f_in]
        b = wb[2 * li + 1][...]                          # [f_out, 1] float32
        # MXU matmul, f32 accumulation regardless of input dtype.
        h = jnp.dot(w, h, preferred_element_type=jnp.float32)   # [f_out, tile_n]
        h = h + b                                        # bias broadcast along lanes
        if li < num_linears - 1:
            h = jnp.maximum(h, 0.0)                      # ReLU on all but last layer
            nxt_dtype = wb[2 * (li + 1)].dtype
            if nxt_dtype != jnp.float32:
                # Precision trade-off: activations rounded to the weight dtype
                # (e.g. bf16) to keep the next matmul at native MXU rate.
                h = h.astype(nxt_dtype)
    o_ref[...] = h.T.astype(o_ref.dtype)                 # back to [tile_n, node_out]


# --------------------------------------------------------------------------- #
# Tiling / topology helpers
# --------------------------------------------------------------------------- #
def _tpu_topology():
    """Best-effort (tensorcores_per_chip, per-core VMEM bytes).

    Falls back to the most conservative realistic values (1 core, 64 MiB VMEM,
    i.e. v7x-like) if the query is unavailable or shaped differently.
    """
    cores, vmem_cap = 1, 64 * 1024 * 1024
    try:
        info = pltpu.get_tpu_info()
        for name in ("vmem_capacity_bytes", "vmem_size_bytes", "vmem_bytes"):
            v = getattr(info, name, None)
            if isinstance(v, int) and v > 0:
                vmem_cap = int(v)
                break
        for name in ("num_cores", "cores_per_chip", "core_count",
                     "tensor_cores_per_chip", "num_tensorcores"):
            v = getattr(info, name, None)
            if isinstance(v, int) and v > 0:
                cores = int(v)
                break
    except Exception:
        pass
    return cores, vmem_cap


def _pick_tile_n(n, requested, num_cores, align):
    """Node tile: `align`-sublane aligned, as large as requested; mid-sized N is
    split so multi-TensorCore chips (v7x) keep grid >= num_cores; single-core
    chips (v5e/v6e) never pay an extra grid step for it."""
    requested = max(align, (requested // align) * align)
    if n <= align:
        return n                                   # one tiny full-extent block
    tn = min(requested, _round_up(n, align))
    if num_cores > 1:
        per_core = _round_up(pl.cdiv(n, num_cores), align)
        tn = min(tn, max(align, per_core))
    if tn > n:                                     # blocks may not exceed the array
        tn = max(align, (n // align) * align)      # ragged tail masked by Pallas
    return tn


def _vmem_bytes_estimate(tn, dims, x_itemsize, w_itemsize):
    """Generous VMEM estimate: accounts for the 128-lane padding of the narrow
    feature dims in the [tile_n, features] blocks plus f32 intermediates."""
    lane = lambda d: _round_up(d, 128)
    sub = lambda d: _round_up(d, 8)
    node_in, node_out = dims[0], dims[-1]
    max_d = max(dims)
    # double-buffered streamed input/output blocks
    stream = 2 * tn * lane(node_in) * x_itemsize + 2 * tn * lane(node_out) * x_itemsize
    # resident weights / f32 biases (double-buffered by the pipeline machinery)
    params = sum(2 * sub(dout) * lane(din) * w_itemsize
                 for din, dout in zip(dims[:-1], dims[1:]))
    params += sum(2 * sub(dout) * 128 * 4 for dout in dims[1:])
    # transient values: transposed input, ~3 live f32 activations, transposed output
    interm = (tn * sub(max_d) * x_itemsize
              + 3 * tn * sub(max_d) * 4
              + tn * lane(node_out) * 4)
    return stream + params + interm


# --------------------------------------------------------------------------- #
# Wrapper
# --------------------------------------------------------------------------- #
def decoder_forward(x, weights, biases, *, tile_n=16384):
    """Decoder.forward.

    x: [N, node_in]; weights[i]: [f_in, f_out]; biases[i]: [1, f_out] (PyTorch layout).
    Returns [N, node_out] in x.dtype.

    The kernel consumes / produces the natural [nodes, features] layout directly
    (no wrapper transpose / pad / slice HBM passes); internally it computes
    nodes-on-lanes.  Callers that keep params resident should store weights
    pre-transposed ([f_out, f_in]) and biases as f32 columns so the tiny casts
    below fold away under jit.
    """
    N, node_in = x.shape
    node_out = weights[-1].shape[1]
    num_linears = len(weights)
    dims = [node_in] + [w.shape[1] for w in weights]

    weights_t = [w.T for w in weights]                               # [f_out, f_in], a few KB
    biases_c = [b.reshape(-1, 1).astype(jnp.float32) for b in biases]  # f32 [f_out, 1]

    x_isz = jnp.dtype(x.dtype).itemsize
    w_isz = jnp.dtype(weights_t[0].dtype).itemsize
    # Sublane alignment so the in-kernel transposes always see natively tiled shapes.
    align = max(8, 32 // x_isz)                                      # f32:8, bf16:16, int8:32

    num_cores, vmem_cap = _tpu_topology()
    vmem_budget = (vmem_cap * 3) // 4
    tn = _pick_tile_n(N, tile_n, num_cores, align)
    while tn > align and (_vmem_bytes_estimate(tn, dims, x_isz, w_isz) * 3) // 2 > vmem_budget:
        tn = max(align, ((tn // 2) // align) * align)
    est = _vmem_bytes_estimate(tn, dims, x_isz, w_isz)
    vmem_limit = int(min(vmem_budget, max(32 * 1024 * 1024, (est * 3) // 2)))

    grid = (pl.cdiv(N, tn),)                                         # ragged tail block masked

    in_specs = [pl.BlockSpec((tn, node_in), lambda i: (i, 0))]
    wb_args = []
    for w_t, b_c in zip(weights_t, biases_c):
        in_specs.append(pl.BlockSpec(w_t.shape, lambda i: (0, 0)))   # fetched once (constant idx)
        in_specs.append(pl.BlockSpec(b_c.shape, lambda i: (0, 0)))
        wb_args.extend([w_t, b_c])
    out_spec = pl.BlockSpec((tn, node_out), lambda i: (i, 0))
    # TODO(synk): pack the tiny per-layer weight/bias blocks into one constant array
    # to cut the number of (once-fetched) constant BlockSpecs.

    flops = 2 * N * sum(a * b for a, b in zip(dims[:-1], dims[1:]))
    bytes_accessed = (x.size * x_isz
                      + sum(a.size * jnp.dtype(a.dtype).itemsize for a in wb_args)
                      + N * node_out * x_isz)
    cost = pl.CostEstimate(flops=int(flops), transcendentals=0,
                           bytes_accessed=int(bytes_accessed))

    return pl.pallas_call(
        functools.partial(_mlp_kernel, num_linears),
        out_shape=jax.ShapeDtypeStruct((N, node_out), x.dtype),
        grid_spec=pltpu.PrefetchScalarGridSpec(
            num_scalar_prefetch=0,
            grid=grid,
            in_specs=in_specs,
            out_specs=out_spec,
        ),
        compiler_params=pltpu.CompilerParams(
            dimension_semantics=("parallel",),
            vmem_limit_bytes=vmem_limit),
        cost_estimate=cost,
    )(x, *wb_args)


# --------------------------------------------------------------------------- #
# Params / reference
# --------------------------------------------------------------------------- #
def init_mlp_params(key, in_dim, hidden_list, out_dim, dtype=jnp.float32):
    """Deterministic init mirroring nn.Linear shapes of MLP(in_dim, hidden_list, out_dim)."""
    dims = [in_dim] + list(hidden_list) + [out_dim]
    weights, biases = [], []
    for i in range(len(dims) - 1):
        key, kw, kb = jax.random.split(key, 3)
        fan_in = dims[i]
        bound = 1.0 / jnp.sqrt(fan_in)
        w = jax.random.uniform(kw, (dims[i], dims[i + 1]),
                               minval=-bound, maxval=bound, dtype=dtype)
        b = jax.random.uniform(kb, (1, dims[i + 1]),
                               minval=-bound, maxval=bound, dtype=dtype)
        weights.append(w)
        biases.append(b)
    return weights, biases


def decoder_reference(x, weights, biases):
    h = x
    for i, (w, b) in enumerate(zip(weights, biases)):
        h = h @ w + b
        if i < len(weights) - 1:
            h = jnp.maximum(h, 0.0)
    return h


if __name__ == "__main__":
    node_in, node_out = 32, 16
    mlp_layers, mlp_hidden = 2, 32

    key = jax.random.PRNGKey(0)
    key, kx = jax.random.split(key)
    weights, biases = init_mlp_params(key, node_in, [mlp_hidden] * mlp_layers, node_out)

    # 1) f32, ragged N, single full-extent block (N <= tile).
    N = 200
    x = jax.random.normal(kx, (N, node_in), dtype=jnp.float32)
    out = jax.block_until_ready(decoder_forward(x, weights, biases))
    ref = decoder_reference(x, weights, biases)
    assert out.shape == (N, node_out)
    assert jnp.allclose(out, ref, atol=1e-4, rtol=1e-4)

    # 2) f32, multi-block grid with a ragged (masked) tail block.
    N2 = 1200
    key, kx2 = jax.random.split(key)
    x2 = jax.random.normal(kx2, (N2, node_in), dtype=jnp.float32)
    out2 = jax.block_until_ready(decoder_forward(x2, weights, biases, tile_n=512))
    ref2 = decoder_reference(x2, weights, biases)
    assert out2.shape == (N2, node_out)
    assert jnp.allclose(out2, ref2, atol=1e-4, rtol=1e-4)

    # 3) bf16 x / weights (biases kept f32 inside the kernel); loose check.
    x_bf = x.astype(jnp.bfloat16)
    w_bf = [w.astype(jnp.bfloat16) for w in weights]
    b_bf = [b.astype(jnp.bfloat16) for b in biases]
    out_bf = jax.block_until_ready(decoder_forward(x_bf, w_bf, b_bf))
    ref_bf = decoder_reference(x_bf.astype(jnp.float32),
                               [w.astype(jnp.float32) for w in w_bf],
                               [b.astype(jnp.float32) for b in b_bf])
    assert out_bf.shape == (N, node_out)
    assert float(jnp.max(jnp.abs(out_bf.astype(jnp.float32) - ref_bf))) < 0.1

    print("KERNEL_OK")
</pallas_src>

<mosaic_0001>
module attributes {stable_mosaic.version = 11 : i64} {
  func.func @_mlp_kernel(%arg0: i32, %arg1: memref<200x32xf32, #tpu.memory_space<vmem>>, %arg2: memref<32x32xf32, #tpu.memory_space<vmem>>, %arg3: memref<32x1xf32, #tpu.memory_space<vmem>>, %arg4: memref<32x32xf32, #tpu.memory_space<vmem>>, %arg5: memref<32x1xf32, #tpu.memory_space<vmem>>, %arg6: memref<16x32xf32, #tpu.memory_space<vmem>>, %arg7: memref<16x1xf32, #tpu.memory_space<vmem>>, %arg8: memref<200x16xf32, #tpu.memory_space<vmem>>) attributes {dimension_semantics = [#tpu.dimension_semantics<parallel>], iteration_bounds = array<i64: 1>, scalar_prefetch = 0 : i64, scratch_operands = 0 : i64, tpu.core_type = #tpu.core_type<tc>, window_params = [{transform_indices = @transform_0, window_bounds = array<i64: 200, 32>}, {pipeline_mode = #tpu.pipeline_mode<synchronous>, transform_indices = @transform_1, window_bounds = array<i64: 32, 32>}, {pipeline_mode = #tpu.pipeline_mode<synchronous>, transform_indices = @transform_2, window_bounds = array<i64: 32, 1>}, {pipeline_mode = #tpu.pipeline_mode<synchronous>, transform_indices = @transform_3, window_bounds = array<i64: 32, 32>}, {pipeline_mode = #tpu.pipeline_mode<synchronous>, transform_indices = @transform_4, window_bounds = array<i64: 32, 1>}, {pipeline_mode = #tpu.pipeline_mode<synchronous>, transform_indices = @transform_5, window_bounds = array<i64: 16, 32>}, {pipeline_mode = #tpu.pipeline_mode<synchronous>, transform_indices = @transform_6, window_bounds = array<i64: 16, 1>}, {transform_indices = @transform_7, window_bounds = array<i64: 200, 16>}]} {
    %c0 = arith.constant 0 : index
    %c0_0 = arith.constant 0 : index
    %0 = vector.load %arg1[%c0, %c0_0] : memref<200x32xf32, #tpu.memory_space<vmem>>, vector<200x32xf32>
    %1 = tpu.transpose %0, [1, 0] : vector<200x32xf32> -> vector<32x200xf32>
    %c0_1 = arith.constant 0 : index
    %c0_2 = arith.constant 0 : index
    %2 = vector.load %arg2[%c0_1, %c0_2] : memref<32x32xf32, #tpu.memory_space<vmem>>, vector<32x32xf32>
    %c0_3 = arith.constant 0 : index
    %c0_4 = arith.constant 0 : index
    %3 = vector.load %arg3[%c0_3, %c0_4] : memref<32x1xf32, #tpu.memory_space<vmem>>, vector<32x1xf32>
    %cst = arith.constant dense<0.000000e+00> : vector<32x200xf32>
    %4 = tpu.matmul %2, %1, %cst {dimension_numbers = #tpu.dot_dimension_numbers<[1], [0], [0], [1], [0, 0, 1, 1], [], []>} : vector<32x32xf32>, vector<32x200xf32>, vector<32x200xf32> -> vector<32x200xf32>
    %5 = vector.broadcast %3 : vector<32x1xf32> to vector<32x200xf32>
    %6 = arith.addf %4, %5 : vector<32x200xf32>
    %cst_5 = arith.constant 0.000000e+00 : f32
    %7 = vector.broadcast %cst_5 : f32 to vector<32x200xf32>
    %8 = arith.maximumf %6, %7 : vector<32x200xf32>
    %c0_6 = arith.constant 0 : index
    %c0_7 = arith.constant 0 : index
    %9 = vector.load %arg4[%c0_6, %c0_7] : memref<32x32xf32, #tpu.memory_space<vmem>>, vector<32x32xf32>
    %c0_8 = arith.constant 0 : index
    %c0_9 = arith.constant 0 : index
    %10 = vector.load %arg5[%c0_8, %c0_9] : memref<32x1xf32, #tpu.memory_space<vmem>>, vector<32x1xf32>
    %cst_10 = arith.constant dense<0.000000e+00> : vector<32x200xf32>
    %11 = tpu.matmul %9, %8, %cst_10 {dimension_numbers = #tpu.dot_dimension_numbers<[1], [0], [0], [1], [0, 0, 1, 1], [], []>} : vector<32x32xf32>, vector<32x200xf32>, vector<32x200xf32> -> vector<32x200xf32>
    %12 = vector.broadcast %10 : vector<32x1xf32> to vector<32x200xf32>
    %13 = arith.addf %11, %12 : vector<32x200xf32>
    %cst_11 = arith.constant 0.000000e+00 : f32
    %14 = vector.broadcast %cst_11 : f32 to vector<32x200xf32>
    %15 = arith.maximumf %13, %14 : vector<32x200xf32>
    %c0_12 = arith.constant 0 : index
    %c0_13 = arith.constant 0 : index
    %16 = vector.load %arg6[%c0_12, %c0_13] : memref<16x32xf32, #tpu.memory_space<vmem>>, vector<16x32xf32>
    %c0_14 = arith.constant 0 : index
    %c0_15 = arith.constant 0 : index
    %17 = vector.load %arg7[%c0_14, %c0_15] : memref<16x1xf32, #tpu.memory_space<vmem>>, vector<16x1xf32>
    %cst_16 = arith.constant dense<0.000000e+00> : vector<16x200xf32>
    %18 = tpu.matmul %16, %15, %cst_16 {dimension_numbers = #tpu.dot_dimension_numbers<[1], [0], [0], [1], [0, 0, 1, 1], [], []>} : vector<16x32xf32>, vector<32x200xf32>, vector<16x200xf32> -> vector<16x200xf32>
    %19 = vector.broadcast %17 : vector<16x1xf32> to vector<16x200xf32>
    %20 = arith.addf %18, %19 : vector<16x200xf32>
    %21 = tpu.transpose %20, [1, 0] : vector<16x200xf32> -> vector<200x16xf32>
    %c0_17 = arith.constant 0 : index
    %c0_18 = arith.constant 0 : index
    %22 = vector.load %arg8[%c0_17, %c0_18] : memref<200x16xf32, #tpu.memory_space<vmem>>, vector<200x16xf32>
    tpu.vector_store %arg8[%c0_17, %c0_18], %21 {strides = array<i32>} : memref<200x16xf32, #tpu.memory_space<vmem>>, vector<200x16xf32>,
    return
  }
  func.func @transform_0(%arg0: i32) -> (i32, i32) {
    %c0_i32 = arith.constant 0 : i32
    %c0_i32_0 = arith.constant 0 : i32
    return %arg0, %c0_i32 : i32, i32
  }
  func.func @transform_1(%arg0: i32) -> (i32, i32) {
    %c0_i32 = arith.constant 0 : i32
    %c0_i32_0 = arith.constant 0 : i32
    %c0_i32_1 = arith.constant 0 : i32
    return %c0_i32, %c0_i32_0 : i32, i32
  }
  func.func @transform_2(%arg0: i32) -> (i32, i32) {
    %c0_i32 = arith.constant 0 : i32
    %c0_i32_0 = arith.constant 0 : i32
    %c0_i32_1 = arith.constant 0 : i32
    return %c0_i32, %c0_i32_0 : i32, i32
  }
  func.func @transform_3(%arg0: i32) -> (i32, i32) {
    %c0_i32 = arith.constant 0 : i32
    %c0_i32_0 = arith.constant 0 : i32
    %c0_i32_1 = arith.constant 0 : i32
    return %c0_i32, %c0_i32_0 : i32, i32
  }
  func.func @transform_4(%arg0: i32) -> (i32, i32) {
    %c0_i32 = arith.constant 0 : i32
    %c0_i32_0 = arith.constant 0 : i32
    %c0_i32_1 = arith.constant 0 : i32
    return %c0_i32, %c0_i32_0 : i32, i32
  }
  func.func @transform_5(%arg0: i32) -> (i32, i32) {
    %c0_i32 = arith.constant 0 : i32
    %c0_i32_0 = arith.constant 0 : i32
    %c0_i32_1 = arith.constant 0 : i32
    return %c0_i32, %c0_i32_0 : i32, i32
  }
  func.func @transform_6(%arg0: i32) -> (i32, i32) {
    %c0_i32 = arith.constant 0 : i32
    %c0_i32_0 = arith.constant 0 : i32
    %c0_i32_1 = arith.constant 0 : i32
    return %c0_i32, %c0_i32_0 : i32, i32
  }
  func.func @transform_7(%arg0: i32) -> (i32, i32) {
    %c0_i32 = arith.constant 0 : i32
    %c0_i32_0 = arith.constant 0 : i32
    return %arg0, %c0_i32 : i32, i32
  }
}

</mosaic_0001>

<llo_original>
// kernel: tpu_custom_call.1
$region0: #{tpu_custom_call.1}
  #allocation0 [shape = 'u32[]', space=smem, size = 0x4, offset = 0x4, fixed_abs, tag = 'smem constant byte address 0x4 - core index']
  #allocation1 [shape = 'u32[144,128]{1,0:T(1,128)}', space=vmem, size = 0x12000, scoped, tag = 'internal scratch']
  %s0 = inlined_call_operand.vmem [shape: f32[200,32], index: 0, kind: input, shape index: {}]
  %s1 = inlined_call_operand.vmem [shape: f32[32,32], index: 1, kind: input, shape index: {}]
  %s2 = inlined_call_operand.vmem [shape: f32[32,1], index: 2, kind: input, shape index: {}]
  %s3 = inlined_call_operand.vmem [shape: f32[32,32], index: 3, kind: input, shape index: {}]
  %s4 = inlined_call_operand.vmem [shape: f32[32,1], index: 4, kind: input, shape index: {}]
  %s5 = inlined_call_operand.vmem [shape: f32[16,32], index: 5, kind: input, shape index: {}]
  %s6 = inlined_call_operand.vmem [shape: f32[16,1], index: 6, kind: input, shape index: {}]
  %s7 = inlined_call_operand.vmem [shape: f32[200,16], index: 7, kind: output, shape index: {}]
  %s8 = sld [smem:[#allocation0]]
  $region38: #{tpu_custom_call.1} parent=0
    _
  %s10 = ssub.s32 1, %s8
  %s11 = scalar_select 0, %s10, %s8
  // Predicated region
  $region2: #{tpu_custom_call.1} parent=0 // pred_check
    _
  $region3: #{tpu_custom_call.1} parent=0 // pred_check_branch
    %13 = sbr.rel (0) target = $region5
  $region4: #{tpu_custom_call.1} parent=0 // pred_region
    _
  $region5: #{tpu_custom_call.1} parent=0 // pred_fallthru
    _
  // Predicated region
  $region6: #{tpu_custom_call.1} parent=0 // pred_check
    _
  $region7: #{tpu_custom_call.1} parent=0 // pred_check_branch
    %15 = sbr.rel (0) target = $region9
  $region8: #{tpu_custom_call.1} parent=0 // pred_region
    _
  $region9: #{tpu_custom_call.1} parent=0 // pred_fallthru
    _
  // Predicated region
  $region10: #{tpu_custom_call.1} parent=0 // pred_check
    _
  $region11: #{tpu_custom_call.1} parent=0 // pred_check_branch
    %17 = sbr.rel (0) target = $region13
  $region12: #{tpu_custom_call.1} parent=0 // pred_region
    _
  $region13: #{tpu_custom_call.1} parent=0 // pred_fallthru
    _
  // Predicated region
  $region14: #{tpu_custom_call.1} parent=0 // pred_check
    _
  $region15: #{tpu_custom_call.1} parent=0 // pred_check_branch
    %19 = sbr.rel (0) target = $region17
  $region16: #{tpu_custom_call.1} parent=0 // pred_region
    _
  $region17: #{tpu_custom_call.1} parent=0 // pred_fallthru
    _
  // Predicated region
  $region18: #{tpu_custom_call.1} parent=0 // pred_check
    _
  $region19: #{tpu_custom_call.1} parent=0 // pred_check_branch
    %21 = sbr.rel (0) target = $region21
  $region20: #{tpu_custom_call.1} parent=0 // pred_region
    _
  $region21: #{tpu_custom_call.1} parent=0 // pred_fallthru
    _
  // Predicated region
  $region22: #{tpu_custom_call.1} parent=0 // pred_check
    _
  $region23: #{tpu_custom_call.1} parent=0 // pred_check_branch
    %23 = sbr.rel (0) target = $region25
  $region24: #{tpu_custom_call.1} parent=0 // pred_region
    _
  $region25: #{tpu_custom_call.1} parent=0 // pred_fallthru
    _
  // Predicated region
  $region26: #{tpu_custom_call.1} parent=0 // pred_check
    _
  $region27: #{tpu_custom_call.1} parent=0 // pred_check_branch
    %25 = sbr.rel (0) target = $region29
  $region28: #{tpu_custom_call.1} parent=0 // pred_region
    _
  $region29: #{tpu_custom_call.1} parent=0 // pred_fallthru
    _
  %v26 = vld [vmem:[%s0] sm:$0xff]
  %v27 = vld [vmem:[%s0 + $0x8] sm:$0xff]
  %v28 = vld [vmem:[%s0 + $0x10] sm:$0xff]
  %v29 = vld [vmem:[%s0 + $0x18] sm:$0xff]
  %v30 = vld [vmem:[%s0 + $0x20] sm:$0xff]
  %v31 = vld [vmem:[%s0 + $0x28] sm:$0xff]
  %v32 = vld [vmem:[%s0 + $0x30] sm:$0xff]
  %v33 = vld [vmem:[%s0 + $0x38] sm:$0xff]
  %v34 = vld [vmem:[%s0 + $0x40] sm:$0xff]
  %v35 = vld [vmem:[%s0 + $0x48] sm:$0xff]
  %v36 = vld [vmem:[%s0 + $0x50] sm:$0xff]
  %v37 = vld [vmem:[%s0 + $0x58] sm:$0xff]
  %v38 = vld [vmem:[%s0 + $0x60] sm:$0xff]
  %v39 = vld [vmem:[%s0 + $0x68] sm:$0xff]
  %v40 = vld [vmem:[%s0 + $0x70] sm:$0xff]
  %v41 = vld [vmem:[%s0 + $0x78] sm:$0xff]
  %v42 = vld [vmem:[%s0 + $0x80] sm:$0xff]
  %v43 = vld [vmem:[%s0 + $0x88] sm:$0xff]
  %v44 = vld [vmem:[%s0 + $0x90] sm:$0xff]
  %v45 = vld [vmem:[%s0 + $0x98] sm:$0xff]
  %v46 = vld [vmem:[%s0 + $0xa0] sm:$0xff]
  %v47 = vld [vmem:[%s0 + $0xa8] sm:$0xff]
  %v48 = vld [vmem:[%s0 + $0xb0] sm:$0xff]
  %v49 = vld [vmem:[%s0 + $0xb8] sm:$0xff]
  %v50 = vld [vmem:[%s0 + $0xc0] sm:$0xff]
  %v51 = vld [vmem:[%s1] sm:$0xff]
  %v52 = vld [vmem:[%s1 + $0x8] sm:$0xff]
  %v53 = vld [vmem:[%s1 + $0x10] sm:$0xff]
  %v54 = vld [vmem:[%s1 + $0x18] sm:$0xff]
  %v55 = vld [vmem:[%s2] sm:$0xff]
  %v56 = vld [vmem:[%s2 + $0x8] sm:$0xff]
  %v57 = vld [vmem:[%s2 + $0x10] sm:$0xff]
  %v58 = vld [vmem:[%s2 + $0x18] sm:$0xff]
  %60 = vset.pattern.permute.xlu0 0
  %61 = vperm.xlu0 %60, %v55
  %v62 = vpop.permute.xlu0 %61
  %65 = vset.pattern.permute.xlu0 0
  %66 = vperm.xlu0 %65, %v56
  %v67 = vpop.permute.xlu0 %66
  %70 = vset.pattern.permute.xlu0 0
  %71 = vperm.xlu0 %70, %v57
  %v72 = vpop.permute.xlu0 %71
  %75 = vset.pattern.permute.xlu0 0
  %76 = vperm.xlu0 %75, %v58
  %v77 = vpop.permute.xlu0 %76
  %vm79 = vcmask 261120
  %v81 = vsel %vm79, %v51, 0
  %v84 = vsel %vm79, %v52, 0
  %v87 = vsel %vm79, %v53, 0
  %v90 = vsel %vm79, %v54, 0
  %v93 = vsel %vm79, %v26, 0
  %v96 = vsel %vm79, %v27, 0
  %v99 = vsel %vm79, %v28, 0
  %v102 = vsel %vm79, %v29, 0
  %v105 = vsel %vm79, %v30, 0
  %v108 = vsel %vm79, %v31, 0
  %v111 = vsel %vm79, %v32, 0
  %v114 = vsel %vm79, %v33, 0
  %v117 = vsel %vm79, %v34, 0
  %v120 = vsel %vm79, %v35, 0
  %v123 = vsel %vm79, %v36, 0
  %v126 = vsel %vm79, %v37, 0
  %v129 = vsel %vm79, %v38, 0
  %v132 = vsel %vm79, %v39, 0
  %v135 = vsel %vm79, %v40, 0
  %v138 = vsel %vm79, %v41, 0
  %v141 = vsel %vm79, %v42, 0
  %v144 = vsel %vm79, %v43, 0
  %v147 = vsel %vm79, %v44, 0
  %v150 = vsel %vm79, %v45, 0
  %v153 = vsel %vm79, %v46, 0
  %v156 = vsel %vm79, %v47, 0
  %v159 = vsel %vm79, %v48, 0
  %v162 = vsel %vm79, %v49, 0
  %v165 = vsel %vm79, %v50, 0
  %167 = vmatprep.subr.mxu0 0.0
  %168 = vmatpush1.xpose.msra.mxu0 %v93
  %169 = vmatprep.subr.mxu0 0.0
  %170 = vmatpush1.xpose.msra.mxu0 %v96
  %171 = vmatprep.subr.mxu0 0.0
  %172 = vmatpush1.xpose.msra.mxu0 %v99
  %173 = vmatprep.subr.mxu0 0.0
  %174 = vmatpush1.xpose.msra.mxu0 %v102
  %175 = vmatprep.subr.mxu0 0.0
  %176 = vmatpush1.xpose.msra.mxu0 %v105
  %177 = vmatprep.subr.mxu0 0.0
  %178 = vmatpush1.xpose.msra.mxu0 %v108
  %179 = vmatprep.subr.mxu0 0.0
  %180 = vmatpush1.xpose.msra.mxu0 %v111
  %181 = vmatprep.subr.mxu0 0.0
  %182 = vmatpush1.xpose.msra.mxu0 %v114
  %183 = vmatprep.subr.mxu0 0.0
  %184 = vmatpush1.xpose.msra.mxu0 %v117
  %185 = vmatprep.subr.mxu0 0.0
  %186 = vmatpush1.xpose.msra.mxu0 %v120
  %187 = vmatprep.subr.mxu0 0.0
  %188 = vmatpush1.xpose.msra.mxu0 %v123
  %189 = vmatprep.subr.mxu0 0.0
  %190 = vmatpush1.xpose.msra.mxu0 %v126
  %191 = vmatprep.subr.mxu0 0.0
  %192 = vmatpush1.xpose.msra.mxu0 %v129
  %193 = vmatprep.subr.mxu0 0.0
  %194 = vmatpush1.xpose.msra.mxu0 %v132
  %195 = vmatprep.subr.mxu0 0.0
  %196 = vmatpush1.xpose.msra.mxu0 %v135
  %197 = vmatprep.subr.mxu0 0.0
  %198 = vmatpush1.xpose.msra.mxu0 %v138
  %199 = vmatprep.subr.mxu0 0.0
  %200 = vmatpush1.xpose.msra.mxu0 %v141
  %201 = vmatprep.subr.mxu0 0.0
  %202 = vmatpush1.xpose.msra.mxu0 %v144
  %203 = vmatprep.subr.mxu0 0.0
  %204 = vmatpush1.xpose.msra.mxu0 %v147
  %205 = vmatprep.subr.mxu0 0.0
  %206 = vmatpush1.xpose.msra.mxu0 %v150
  %207 = vmatprep.subr.mxu0 0.0
  %208 = vmatpush1.xpose.msra.mxu0 %v153
  %209 = vmatprep.subr.mxu0 0.0
  %210 = vmatpush1.xpose.msra.mxu0 %v156
  %211 = vmatprep.subr.mxu0 0.0
  %212 = vmatpush1.xpose.msra.mxu0 %v159
  %213 = vmatprep.subr.mxu0 0.0
  %214 = vmatpush1.xpose.msra.mxu0 %v162
  %215 = vmatprep.subr.mxu0 0.0
  %216 = vmatpush1.xpose.msra.mxu0 %v165
  %217 = vmatprep.subr.mxu0 0.0
  %218 = vmatpush1.xpose.msra.mxu0 0.0
  %219 = vmatprep.subr.mxu0 0.0
  %220 = vmatpush1.xpose.msra.mxu0 0.0
  %221 = vmatprep.subr.mxu0 0.0
  %222 = vmatpush1.xpose.msra.mxu0 0.0
  %223 = vmatprep.subr.mxu0 0.0
  %224 = vmatpush1.xpose.msra.mxu0 0.0
  %225 = vmatprep.subr.mxu0 0.0
  %226 = vmatpush1.xpose.msra.mxu0 0.0
  %227 = vmatprep.subr.mxu0 0.0
  %228 = vmatpush1.xpose.msra.mxu0 0.0
  %229 = vmatprep.subr.mxu0 0.0
  %230 = vmatpush1.xpose.msra.mxu0 0.0
  %231 = vmatprep.mubr.f32.mxu0 0.0
  %232 = vmatmul.mubr.f32.gmra.mrb[0].mxu0 %v81
  %v233 = vpop.f32.mrb[0].mxu0
  %v234 = vadd.f32 %v62, %v233
  %v235 = vpop.f32.mrb[0].mxu0
  %v236 = vadd.f32 %v62, %v235
  %237 = vmatprep.mubr.f32.mxu0 0.0
  %238 = vmatmul.mubr.f32.gmra.mrb[0].mxu0 %v84
  %v239 = vpop.f32.mrb[0].mxu0
  %v240 = vadd.f32 %v67, %v239
  %v241 = vpop.f32.mrb[0].mxu0
  %v242 = vadd.f32 %v67, %v241
  %243 = vmatprep.mubr.f32.mxu0 0.0
  %244 = vmatmul.mubr.f32.gmra.mrb[0].mxu0 %v87
  %v245 = vpop.f32.mrb[0].mxu0
  %v246 = vadd.f32 %v72, %v245
  %v247 = vpop.f32.mrb[0].mxu0
  %v248 = vadd.f32 %v72, %v247
  %249 = vmatprep.mubr.f32.mxu0 0.0
  %250 = vmatmul.mubr.f32.gmra.mrb[0].mxu0 %v90
  %v251 = vpop.f32.mrb[0].mxu0
  %v252 = vadd.f32 %v77, %v251
  %v253 = vpop.f32.mrb[0].mxu0
  %v254 = vadd.f32 %v77, %v253
  %255 = vdwg.mxu0
  %v256 = vmax.f32 %v234, 0.0
  %v257 = vmax.f32 %v236, 0.0
  %v258 = vmax.f32 %v240, 0.0
  %v259 = vmax.f32 %v242, 0.0
  %v260 = vmax.f32 %v246, 0.0
  %v261 = vmax.f32 %v248, 0.0
  %v262 = vmax.f32 %v252, 0.0
  %v263 = vmax.f32 %v254, 0.0
  %v264 = vld [vmem:[%s3] sm:$0xff]
  %v265 = vld [vmem:[%s3 + $0x8] sm:$0xff]
  %v266 = vld [vmem:[%s3 + $0x10] sm:$0xff]
  %v267 = vld [vmem:[%s3 + $0x18] sm:$0xff]
  %v268 = vld [vmem:[%s4] sm:$0xff]
  %v269 = vld [vmem:[%s4 + $0x8] sm:$0xff]
  %v270 = vld [vmem:[%s4 + $0x10] sm:$0xff]
  %v271 = vld [vmem:[%s4 + $0x18] sm:$0xff]
  %273 = vset.pattern.permute.xlu0 0
  %274 = vperm.xlu0 %273, %v268
  %v275 = vpop.permute.xlu0 %274
  %278 = vset.pattern.permute.xlu0 0
  %279 = vperm.xlu0 %278, %v269
  %v280 = vpop.permute.xlu0 %279
  %283 = vset.pattern.permute.xlu0 0
  %284 = vperm.xlu0 %283, %v270
  %v285 = vpop.permute.xlu0 %284
  %288 = vset.pattern.permute.xlu0 0
  %289 = vperm.xlu0 %288, %v271
  %v290 = vpop.permute.xlu0 %289
  %v293 = vsel %vm79, %v264, 0
  %v296 = vsel %vm79, %v265, 0
  %v299 = vsel %vm79, %v266, 0
  %v302 = vsel %vm79, %v267, 0
  %304 = vmatprep.subr.mxu0 %v257
  %305 = vmatpush1.msra.mxu0 %v256
  %306 = vmatprep.subr.mxu0 %v259
  %307 = vmatpush1.msra.mxu0 %v258
  %308 = vmatprep.subr.mxu0 %v261
  %309 = vmatpush1.msra.mxu0 %v260
  %310 = vmatprep.subr.mxu0 %v263
  %311 = vmatpush1.msra.mxu0 %v262
  %312 = vmatprep.subr.mxu0 0.0
  %313 = vmatpush1.msra.mxu0 0.0
  %314 = vmatprep.subr.mxu0 0.0
  %315 = vmatpush1.msra.mxu0 0.0
  %316 = vmatprep.subr.mxu0 0.0
  %317 = vmatpush1.msra.mxu0 0.0
  %318 = vmatprep.subr.mxu0 0.0
  %319 = vmatpush1.msra.mxu0 0.0
  %320 = vmatprep.subr.mxu0 0.0
  %321 = vmatpush1.msra.mxu0 0.0
  %322 = vmatprep.subr.mxu0 0.0
  %323 = vmatpush1.msra.mxu0 0.0
  %324 = vmatprep.subr.mxu0 0.0
  %325 = vmatpush1.msra.mxu0 0.0
  %326 = vmatprep.subr.mxu0 0.0
  %327 = vmatpush1.msra.mxu0 0.0
  %328 = vmatprep.subr.mxu0 0.0
  %329 = vmatpush1.msra.mxu0 0.0
  %330 = vmatprep.subr.mxu0 0.0
  %331 = vmatpush1.msra.mxu0 0.0
  %332 = vmatprep.subr.mxu0 0.0
  %333 = vmatpush1.msra.mxu0 0.0
  %334 = vmatprep.subr.mxu0 0.0
  %335 = vmatpush1.msra.mxu0 0.0
  %336 = vmatprep.subr.mxu0 0.0
  %337 = vmatpush1.msra.mxu0 0.0
  %338 = vmatprep.subr.mxu0 0.0
  %339 = vmatpush1.msra.mxu0 0.0
  %340 = vmatprep.subr.mxu0 0.0
  %341 = vmatpush1.msra.mxu0 0.0
  %342 = vmatprep.subr.mxu0 0.0
  %343 = vmatpush1.msra.mxu0 0.0
  %344 = vmatprep.subr.mxu0 0.0
  %345 = vmatpush1.msra.mxu0 0.0
  %346 = vmatprep.subr.mxu0 0.0
  %347 = vmatpush1.msra.mxu0 0.0
  %348 = vmatprep.subr.mxu0 0.0
  %349 = vmatpush1.msra.mxu0 0.0
  %350 = vmatprep.subr.mxu0 0.0
  %351 = vmatpush1.msra.mxu0 0.0
  %352 = vmatprep.subr.mxu0 0.0
  %353 = vmatpush1.msra.mxu0 0.0
  %354 = vmatprep.subr.mxu0 0.0
  %355 = vmatpush1.msra.mxu0 0.0
  %356 = vmatprep.subr.mxu0 0.0
  %357 = vmatpush1.msra.mxu0 0.0
  %358 = vmatprep.subr.mxu0 0.0
  %359 = vmatpush1.msra.mxu0 0.0
  %360 = vmatprep.subr.mxu0 0.0
  %361 = vmatpush1.msra.mxu0 0.0
  %362 = vmatprep.subr.mxu0 0.0
  %363 = vmatpush1.msra.mxu0 0.0
  %364 = vmatprep.subr.mxu0 0.0
  %365 = vmatpush1.msra.mxu0 0.0
  %366 = vmatprep.subr.mxu0 0.0
  %367 = vmatpush1.msra.mxu0 0.0
  %368 = vmatprep.mubr.f32.mxu0 0.0
  %369 = vmatmul.mubr.f32.gmra.mrb[0].mxu0 %v293
  %v370 = vpop.f32.mrb[0].mxu0
  %v371 = vadd.f32 %v275, %v370
  %v372 = vpop.f32.mrb[0].mxu0
  %v373 = vadd.f32 %v275, %v372
  %374 = vmatprep.mubr.f32.mxu0 0.0
  %375 = vmatmul.mubr.f32.gmra.mrb[0].mxu0 %v296
  %v376 = vpop.f32.mrb[0].mxu0
  %v377 = vadd.f32 %v280, %v376
  %v378 = vpop.f32.mrb[0].mxu0
  %v379 = vadd.f32 %v280, %v378
  %380 = vmatprep.mubr.f32.mxu0 0.0
  %381 = vmatmul.mubr.f32.gmra.mrb[0].mxu0 %v299
  %v382 = vpop.f32.mrb[0].mxu0
  %v383 = vadd.f32 %v285, %v382
  %v384 = vpop.f32.mrb[0].mxu0
  %v385 = vadd.f32 %v285, %v384
  %386 = vmatprep.mubr.f32.mxu0 0.0
  %387 = vmatmul.mubr.f32.gmra.mrb[0].mxu0 %v302
  %v388 = vpop.f32.mrb[0].mxu0
  %v389 = vadd.f32 %v290, %v388
  %v390 = vpop.f32.mrb[0].mxu0
  %v391 = vadd.f32 %v290, %v390
  %392 = vdwg.mxu0
  %v393 = vmax.f32 %v371, 0.0
  %v394 = vmax.f32 %v373, 0.0
  %v395 = vmax.f32 %v377, 0.0
  %v396 = vmax.f32 %v379, 0.0
  %v397 = vmax.f32 %v383, 0.0
  %v398 = vmax.f32 %v385, 0.0
  %v399 = vmax.f32 %v389, 0.0
  %v400 = vmax.f32 %v391, 0.0
  %v401 = vld [vmem:[%s5] sm:$0xff]
  %v402 = vld [vmem:[%s5 + $0x8] sm:$0xff]
  %v403 = vld [vmem:[%s6] sm:$0xff]
  %v404 = vld [vmem:[%s6 + $0x8] sm:$0xff]
  %406 = vset.pattern.permute.xlu0 0
  %407 = vperm.xlu0 %406, %v403
  %v408 = vpop.permute.xlu0 %407
  %411 = vset.pattern.permute.xlu0 0
  %412 = vperm.xlu0 %411, %v404
  %v413 = vpop.permute.xlu0 %412
  %v416 = vsel %vm79, %v401, 0
  %v419 = vsel %vm79, %v402, 0
  %421 = vmatprep.subr.mxu0 %v394
  %422 = vmatpush1.msra.mxu0 %v393
  %423 = vmatprep.subr.mxu0 %v396
  %424 = vmatpush1.msra.mxu0 %v395
  %425 = vmatprep.subr.mxu0 %v398
  %426 = vmatpush1.msra.mxu0 %v397
  %427 = vmatprep.subr.mxu0 %v400
  %428 = vmatpush1.msra.mxu0 %v399
  %429 = vmatprep.subr.mxu0 0.0
  %430 = vmatpush1.msra.mxu0 0.0
  %431 = vmatprep.subr.mxu0 0.0
  %432 = vmatpush1.msra.mxu0 0.0
  %433 = vmatprep.subr.mxu0 0.0
  %434 = vmatpush1.msra.mxu0 0.0
  %435 = vmatprep.subr.mxu0 0.0
  %436 = vmatpush1.msra.mxu0 0.0
  %437 = vmatprep.subr.mxu0 0.0
  %438 = vmatpush1.msra.mxu0 0.0
  %439 = vmatprep.subr.mxu0 0.0
  %440 = vmatpush1.msra.mxu0 0.0
  %441 = vmatprep.subr.mxu0 0.0
  %442 = vmatpush1.msra.mxu0 0.0
  %443 = vmatprep.subr.mxu0 0.0
  %444 = vmatpush1.msra.mxu0 0.0
  %445 = vmatprep.subr.mxu0 0.0
  %446 = vmatpush1.msra.mxu0 0.0
  %447 = vmatprep.subr.mxu0 0.0
  %448 = vmatpush1.msra.mxu0 0.0
  %449 = vmatprep.subr.mxu0 0.0
  %450 = vmatpush1.msra.mxu0 0.0
  %451 = vmatprep.subr.mxu0 0.0
  %452 = vmatpush1.msra.mxu0 0.0
  %453 = vmatprep.subr.mxu0 0.0
  %454 = vmatpush1.msra.mxu0 0.0
  %455 = vmatprep.subr.mxu0 0.0
  %456 = vmatpush1.msra.mxu0 0.0
  %457 = vmatprep.subr.mxu0 0.0
  %458 = vmatpush1.msra.mxu0 0.0
  %459 = vmatprep.subr.mxu0 0.0
  %460 = vmatpush1.msra.mxu0 0.0
  %461 = vmatprep.subr.mxu0 0.0
  %462 = vmatpush1.msra.mxu0 0.0
  %463 = vmatprep.subr.mxu0 0.0
  %464 = vmatpush1.msra.mxu0 0.0
  %465 = vmatprep.subr.mxu0 0.0
  %466 = vmatpush1.msra.mxu0 0.0
  %467 = vmatprep.subr.mxu0 0.0
  %468 = vmatpush1.msra.mxu0 0.0
  %469 = vmatprep.subr.mxu0 0.0
  %470 = vmatpush1.msra.mxu0 0.0
  %471 = vmatprep.subr.mxu0 0.0
  %472 = vmatpush1.msra.mxu0 0.0
  %473 = vmatprep.subr.mxu0 0.0
  %474 = vmatpush1.msra.mxu0 0.0
  %475 = vmatprep.subr.mxu0 0.0
  %476 = vmatpush1.msra.mxu0 0.0
  %477 = vmatprep.subr.mxu0 0.0
  %478 = vmatpush1.msra.mxu0 0.0
  %479 = vmatprep.subr.mxu0 0.0
  %480 = vmatpush1.msra.mxu0 0.0
  %481 = vmatprep.subr.mxu0 0.0
  %482 = vmatpush1.msra.mxu0 0.0
  %483 = vmatprep.subr.mxu0 0.0
  %484 = vmatpush1.msra.mxu0 0.0
  %485 = vmatprep.mubr.f32.mxu0 0.0
  %486 = vmatmul.mubr.f32.gmra.mrb[0].mxu0 %v416
  %v487 = vpop.f32.mrb[0].mxu0
  %v488 = vadd.f32 %v408, %v487
  %v489 = vpop.f32.mrb[0].mxu0
  %v490 = vadd.f32 %v408, %v489
  %491 = vmatprep.mubr.f32.mxu0 0.0
  %492 = vmatmul.mubr.f32.gmra.mrb[0].mxu0 %v419
  %v493 = vpop.f32.mrb[0].mxu0
  %v494 = vadd.f32 %v413, %v493
  %v495 = vpop.f32.mrb[0].mxu0
  %v496 = vadd.f32 %v413, %v495
  %497 = vdwg.mxu0
  %498 = vxpose.xlu0.b32.start [1/16] %v488, 128
  %499 = vxpose.xlu0.b32.cont [2/16] %v494, 128
  %500 = vxpose.xlu0.b32.cont [3/16] 0.0, 128
  %501 = vxpose.xlu0.b32.cont [4/16] 0.0, 128
  %502 = vxpose.xlu0.b32.cont [5/16] 0.0, 128
  %503 = vxpose.xlu0.b32.cont [6/16] 0.0, 128
  %504 = vxpose.xlu0.b32.cont [7/16] 0.0, 128
  %505 = vxpose.xlu0.b32.cont [8/16] 0.0, 128
  %506 = vxpose.xlu0.b32.cont [9/16] 0.0, 128
  %507 = vxpose.xlu0.b32.cont [10/16] 0.0, 128
  %508 = vxpose.xlu0.b32.cont [11/16] 0.0, 128
  %509 = vxpose.xlu0.b32.cont [12/16] 0.0, 128
  %510 = vxpose.xlu0.b32.cont [13/16] 0.0, 128
  %511 = vxpose.xlu0.b32.cont [14/16] 0.0, 128
  %512 = vxpose.xlu0.b32.cont [15/16] 0.0, 128
  %513 = vxpose.xlu0.b32.end [16/16] 0.0, 128
  %v514 = vpop.trf.xlu0
  %v515 = vpop.trf.xlu0
  %v516 = vpop.trf.xlu0
  %v517 = vpop.trf.xlu0
  %v518 = vpop.trf.xlu0
  %v519 = vpop.trf.xlu0
  %v520 = vpop.trf.xlu0
  %v521 = vpop.trf.xlu0
  %v522 = vpop.trf.xlu0
  %v523 = vpop.trf.xlu0
  %v524 = vpop.trf.xlu0
  %v525 = vpop.trf.xlu0
  %v526 = vpop.trf.xlu0
  %v527 = vpop.trf.xlu0
  %v528 = vpop.trf.xlu0
  %v529 = vpop.trf.xlu0
  %530 = vxpose.xlu0.b32.start [1/16] %v490, 128
  %531 = vxpose.xlu0.b32.cont [2/16] %v496, 128
  %532 = vxpose.xlu0.b32.cont [3/16] 0.0, 128
  %533 = vxpose.xlu0.b32.cont [4/16] 0.0, 128
  %534 = vxpose.xlu0.b32.cont [5/16] 0.0, 128
  %535 = vxpose.xlu0.b32.cont [6/16] 0.0, 128
  %536 = vxpose.xlu0.b32.cont [7/16] 0.0, 128
  %537 = vxpose.xlu0.b32.cont [8/16] 0.0, 128
  %538 = vxpose.xlu0.b32.cont [9/16] 0.0, 128
  %539 = vxpose.xlu0.b32.cont [10/16] 0.0, 128
  %540 = vxpose.xlu0.b32.cont [11/16] 0.0, 128
  %541 = vxpose.xlu0.b32.cont [12/16] 0.0, 128
  %542 = vxpose.xlu0.b32.cont [13/16] 0.0, 128
  %543 = vxpose.xlu0.b32.cont [14/16] 0.0, 128
  %544 = vxpose.xlu0.b32.cont [15/16] 0.0, 128
  %545 = vxpose.xlu0.b32.end [16/16] 0.0, 128
  %v546 = vpop.trf.xlu0
  %v547 = vpop.trf.xlu0
  %v548 = vpop.trf.xlu0
  %v549 = vpop.trf.xlu0
  %v550 = vpop.trf.xlu0
  %v551 = vpop.trf.xlu0
  %v552 = vpop.trf.xlu0
  %v553 = vpop.trf.xlu0
  %v554 = vpop.trf.xlu0
  %v555 = vpop.trf.xlu0
  %v556 = vpop.trf.xlu0
  %v557 = vpop.trf.xlu0
  %v558 = vpop.trf.xlu0
  %v559 = vpop.trf.xlu0
  %v560 = vpop.trf.xlu0
  %v561 = vpop.trf.xlu0
  %vm562 = vcmask 130048
  %563 = vst.msk [vmem:[%s7] sm:$0xff] %vm562, %v514
  %564 = vst.msk [vmem:[%s7 + $0x8] sm:$0xff] %vm562, %v515
  %565 = vst.msk [vmem:[%s7 + $0x10] sm:$0xff] %vm562, %v516
  %566 = vst.msk [vmem:[%s7 + $0x18] sm:$0xff] %vm562, %v517
  %567 = vst.msk [vmem:[%s7 + $0x20] sm:$0xff] %vm562, %v518
  %568 = vst.msk [vmem:[%s7 + $0x28] sm:$0xff] %vm562, %v519
  %569 = vst.msk [vmem:[%s7 + $0x30] sm:$0xff] %vm562, %v520
  %570 = vst.msk [vmem:[%s7 + $0x38] sm:$0xff] %vm562, %v521
  %571 = vst.msk [vmem:[%s7 + $0x40] sm:$0xff] %vm562, %v522
  %572 = vst.msk [vmem:[%s7 + $0x48] sm:$0xff] %vm562, %v523
  %573 = vst.msk [vmem:[%s7 + $0x50] sm:$0xff] %vm562, %v524
  %574 = vst.msk [vmem:[%s7 + $0x58] sm:$0xff] %vm562, %v525
  %575 = vst.msk [vmem:[%s7 + $0x60] sm:$0xff] %vm562, %v526
  %576 = vst.msk [vmem:[%s7 + $0x68] sm:$0xff] %vm562, %v527
  %577 = vst.msk [vmem:[%s7 + $0x70] sm:$0xff] %vm562, %v528
  %578 = vst.msk [vmem:[%s7 + $0x78] sm:$0xff] %vm562, %v529
  %579 = vst.msk [vmem:[%s7 + $0x80] sm:$0xff] %vm562, %v546
  %580 = vst.msk [vmem:[%s7 + $0x88] sm:$0xff] %vm562, %v547
  %581 = vst.msk [vmem:[%s7 + $0x90] sm:$0xff] %vm562, %v548
  %582 = vst.msk [vmem:[%s7 + $0x98] sm:$0xff] %vm562, %v549
  %583 = vst.msk [vmem:[%s7 + $0xa0] sm:$0xff] %vm562, %v550
  %584 = vst.msk [vmem:[%s7 + $0xa8] sm:$0xff] %vm562, %v551
  %585 = vst.msk [vmem:[%s7 + $0xb0] sm:$0xff] %vm562, %v552
  %586 = vst.msk [vmem:[%s7 + $0xb8] sm:$0xff] %vm562, %v553
  %587 = vst.msk [vmem:[%s7 + $0xc0] sm:$0xff] %vm562, %v554
  // Predicated region
  $region30: #{tpu_custom_call.1} parent=0 // pred_check
    _
  $region31: #{tpu_custom_call.1} parent=0 // pred_check_branch
    %589 = sbr.rel (0) target = $region33
  $region32: #{tpu_custom_call.1} parent=0 // pred_region
    _
  $region33: #{tpu_custom_call.1} parent=0 // pred_fallthru
    _
  // Predicated region
  $region34: #{tpu_custom_call.1} parent=0 // pred_check
    _
  $region35: #{tpu_custom_call.1} parent=0 // pred_check_branch
    %591 = sbr.rel (0) target = $region37
  $region36: #{tpu_custom_call.1} parent=0 // pred_region
    _
  $region37: #{tpu_custom_call.1} parent=0 // pred_fallthru
    _

</llo_original>
